<compile_context>
chip_gen: v7x
topology: tpu7x:2x2x1
jax: 0.10.0
libtpu: 0.0.40
codegen_flags: <defaults>
</compile_context>

<pallas_src>
import functools
import numpy as np
import jax
import jax.numpy as jnp
from jax import lax
from jax.experimental import pallas as pl
from jax.experimental.pallas import tpu as pltpu

_VMEM_LIMIT_BYTES = 48 * 1024 * 1024    # raised scoped VMEM (v5e default is 16 MiB)
_TILE_BUDGET_BYTES = 16 * 1024 * 1024   # double-buffered in+out tile budget
_FUSED_BUDGET_BYTES = 24 * 1024 * 1024  # budget for one fused (H, W) plane


# --------------------------------------------------------------------------
# Weights / reflect padding helpers (trace-time numpy; k_size is static).
# --------------------------------------------------------------------------
def _gaussian_weights(sigma):
    # Matches scipy.ndimage._gaussian_kernel1d with order=0, truncate=4.0.
    radius = int(4.0 * sigma + 0.5)
    x = np.arange(-radius, radius + 1, dtype=np.float64)
    w = np.exp(-0.5 * (x * x) / (sigma * sigma))
    w = w / w.sum()
    return tuple(float(v) for v in w), radius


def _reflect_indices(length, radius):
    # scipy mode='reflect' (== numpy 'symmetric'): (d c b a | a b c d | d c b a)
    idx = np.arange(-radius, length + radius)
    period = 2 * length
    m = np.mod(idx, period)
    m = np.where(m >= length, period - 1 - m, m)
    return m.astype(np.int32)


def _reflect_pad(x, axis, radius):
    """Reflect-pad `x` by `radius` on both sides of `axis` (scipy 'reflect')."""
    if radius == 0:
        return x
    L = x.shape[axis]
    if radius < L:
        pw = [(0, 0)] * x.ndim
        pw[axis] = (radius, radius)
        return jnp.pad(x, pw, mode='symmetric')
    # Tiny axis (pad wider than the axis): fall back to an index gather.
    idx = jnp.asarray(_reflect_indices(L, radius))
    return jnp.take(x, idx, axis=axis)


# --------------------------------------------------------------------------
# Pallas kernels.  All taps use the symmetric-weight pairing:
#   out = w_c * x[c] + sum_s w_s * (x[c-s] + x[c+s])
# --------------------------------------------------------------------------
def _lane_blur_kernel(xp_ref, o_ref, *, radius, out_len, w_center, w_pairs):
    """Blur along the lane (last) dim.  xp_ref: (TM, L+2r) -> o_ref: (TM, L)."""
    xp = xp_ref[...]
    acc = w_center * xp[:, radius:radius + out_len]
    for s in range(1, radius + 1):
        acc = acc + w_pairs[s - 1] * (xp[:, radius - s:radius - s + out_len]
                                      + xp[:, radius + s:radius + s + out_len])
    o_ref[...] = acc.astype(o_ref.dtype)


def _sublane_blur_kernel(xp_ref, o_ref, *, radius, out_len, w_center, w_pairs):
    """Blur along the sublane dim.  xp_ref: (L+2r, TT) -> o_ref: (L, TT)."""
    xp = xp_ref[...]
    acc = w_center * xp[radius:radius + out_len, :]
    for s in range(1, radius + 1):
        acc = acc + w_pairs[s - 1] * (xp[radius - s:radius - s + out_len, :]
                                      + xp[radius + s:radius + s + out_len, :])
    o_ref[...] = acc.astype(o_ref.dtype)


def _fused_hw_blur_kernel(xp_ref, o_ref, *, radius, out_h, out_w,
                          w_center, w_pairs):
    """Blur one (H+2r, W+2r) plane along W (lanes) then H (sublanes)."""
    xp = xp_ref[...]
    # Pass 1: lane-dim taps over all (padded) rows.
    tmp = w_center * xp[:, radius:radius + out_w]
    for s in range(1, radius + 1):
        tmp = tmp + w_pairs[s - 1] * (xp[:, radius - s:radius - s + out_w]
                                      + xp[:, radius + s:radius + s + out_w])
    # Pass 2: sublane-dim taps on the resident intermediate (no HBM round trip).
    acc = w_center * tmp[radius:radius + out_h, :]
    for s in range(1, radius + 1):
        acc = acc + w_pairs[s - 1] * (tmp[radius - s:radius - s + out_h, :]
                                      + tmp[radius + s:radius + s + out_h, :])
    o_ref[...] = acc.astype(o_ref.dtype)


# --------------------------------------------------------------------------
# Tile-size selection (kept under a conservative VMEM budget for v7x's 64 MiB).
# --------------------------------------------------------------------------
def _pick_row_tile(M, Lp, L):
    per_row = (Lp + L) * 4 * 2          # f32, double-buffered in + out
    cap = _TILE_BUDGET_BYTES // max(per_row, 1)
    cap = max(8, min(2048, cap))
    cap -= cap % 8
    cap = max(cap, 8)
    if M <= cap:
        return M
    for tm in range(cap, max(cap // 2, 8) - 1, -8):   # prefer an even split
        if M % tm == 0:
            return tm
    return cap


def _pick_lane_tile(T, Lp, L):
    per_lane = (Lp + L) * 4 * 2
    cap = _TILE_BUDGET_BYTES // max(per_lane, 1)
    cap = max(128, min(8192, cap))
    cap -= cap % 128
    cap = max(cap, 128)
    if T <= cap:
        return T
    for tt in range(cap, max(cap // 2, 128) - 1, -128):
        if T % tt == 0:
            return tt
    return cap


# --------------------------------------------------------------------------
# pallas_call wrappers.
# --------------------------------------------------------------------------
def _blur_last_axis(x2p, L, radius, w_center, w_pairs):
    M, Lp = x2p.shape
    tm = _pick_row_tile(M, Lp, L)
    kernel = functools.partial(_lane_blur_kernel, radius=radius, out_len=L,
                               w_center=w_center, w_pairs=w_pairs)
    return pl.pallas_call(
        kernel,
        out_shape=jax.ShapeDtypeStruct((M, L), jnp.float32),
        grid=(pl.cdiv(M, tm),),
        in_specs=[pl.BlockSpec((tm, Lp), lambda i: (i, 0))],
        out_specs=pl.BlockSpec((tm, L), lambda i: (i, 0)),
        compiler_params=pltpu.CompilerParams(
            dimension_semantics=("parallel",),
            vmem_limit_bytes=_VMEM_LIMIT_BYTES),
    )(x2p)


def _blur_middle_axis(x3p, L, radius, w_center, w_pairs):
    P, Lp, T = x3p.shape
    tt = _pick_lane_tile(T, Lp, L)
    kernel = functools.partial(_sublane_blur_kernel, radius=radius, out_len=L,
                               w_center=w_center, w_pairs=w_pairs)
    return pl.pallas_call(
        kernel,
        out_shape=jax.ShapeDtypeStruct((P, L, T), jnp.float32),
        grid=(P, pl.cdiv(T, tt)),
        in_specs=[pl.BlockSpec((None, Lp, tt), lambda p, j: (p, 0, j))],
        out_specs=pl.BlockSpec((None, L, tt), lambda p, j: (p, 0, j)),
        compiler_params=pltpu.CompilerParams(
            dimension_semantics=("parallel", "parallel"),
            vmem_limit_bytes=_VMEM_LIMIT_BYTES),
    )(x3p)


def _blur_last_two_axes(x3p, H, W, radius, w_center, w_pairs):
    P, Hp, Wp = x3p.shape
    kernel = functools.partial(_fused_hw_blur_kernel, radius=radius,
                               out_h=H, out_w=W,
                               w_center=w_center, w_pairs=w_pairs)
    return pl.pallas_call(
        kernel,
        out_shape=jax.ShapeDtypeStruct((P, H, W), jnp.float32),
        grid=(P,),
        in_specs=[pl.BlockSpec((None, Hp, Wp), lambda p: (p, 0, 0))],
        out_specs=pl.BlockSpec((None, H, W), lambda p: (p, 0, 0)),
        compiler_params=pltpu.CompilerParams(
            dimension_semantics=("parallel",),
            vmem_limit_bytes=_VMEM_LIMIT_BYTES),
    )(x3p)


# --------------------------------------------------------------------------
# Public entry point.
# --------------------------------------------------------------------------
def blur_tensor(x, k_size):
    """JAX/Pallas equivalent of BlurTensor.forward(x, k_size).

    Applies a Gaussian filter with sigma=k_size (truncate=4.0, mode='reflect')
    along every axis of x and returns a float32 array of the same shape.
    k_size is a static Python scalar.
    """
    # TODO(synk): the PyTorch module mutates x.data in place; JAX is
    # functional, so the blurred tensor is returned instead.
    weights, radius = _gaussian_weights(float(k_size))
    w_center = weights[radius]
    w_pairs = tuple(weights[radius + s] for s in range(1, radius + 1))

    out = jnp.asarray(x, jnp.float32)
    shape = out.shape
    ndim = out.ndim
    if ndim == 0 or any(d == 0 for d in shape):
        return out

    # ---- last two axes: fused lane + sublane blur on one resident tile ----
    fused_ok = False
    if ndim >= 2:
        H, W = shape[-2], shape[-1]
        Hp, Wp = H + 2 * radius, W + 2 * radius
        fused_ok = (Hp * Wp + H * W) * 4 * 2 <= _FUSED_BUDGET_BYTES

    if fused_ok:
        P = int(np.prod(shape[:-2]))
        x3 = out.reshape(P, H, W)
        x3p = _reflect_pad(_reflect_pad(x3, 1, radius), 2, radius)
        out = _blur_last_two_axes(x3p, H, W, radius, w_center, w_pairs)
        out = out.reshape(shape)
        remaining = range(ndim - 2)
    else:
        L = shape[-1]
        M = int(np.prod(shape[:-1]))
        x2p = _reflect_pad(out.reshape(M, L), 1, radius)
        out = _blur_last_axis(x2p, L, radius, w_center, w_pairs).reshape(shape)
        remaining = range(ndim - 1)

    # ---- every other axis: sublane blur; trailing dims stay on the lane dim ----
    for axis in remaining:
        L = shape[axis]
        P = int(np.prod(shape[:axis]))
        T = int(np.prod(shape[axis + 1:]))
        x3p = _reflect_pad(out.reshape(P, L, T), 1, radius)
        out = _blur_middle_axis(x3p, L, radius, w_center, w_pairs).reshape(shape)

    return out


# --------------------------------------------------------------------------
# Pure-jnp reference (same math, no Pallas) used only for validation.
# --------------------------------------------------------------------------
def _reference_blur(x, k_size):
    weights, radius = _gaussian_weights(float(k_size))
    out = jnp.asarray(x, jnp.float32)
    for axis in range(out.ndim):
        L = out.shape[axis]
        idx = jnp.asarray(_reflect_indices(L, radius))
        xp = jnp.take(out, idx, axis=axis)
        acc = jnp.zeros_like(out)
        for t, w in enumerate(weights):
            acc = acc + w * lax.slice_in_dim(xp, t, t + L, axis=axis)
        out = acc
    return out


if __name__ == "__main__":
    key = jax.random.PRNGKey(0)
    x = jax.random.normal(key, (2, 4, 16, 16), dtype=jnp.float32)  # NCHW
    k_size = 1.0  # sigma, static scalar

    y = blur_tensor(x, k_size)
    jax.block_until_ready(y)

    assert y.shape == x.shape and y.dtype == jnp.float32
    ref = _reference_blur(x, k_size)
    err = float(jnp.max(jnp.abs(y - ref)))
    assert err < 1e-4, f"max abs error vs reference: {err}"
    print("KERNEL_OK")
</pallas_src>

<mosaic_0001>
module attributes {stable_mosaic.version = 11 : i64} {
  func.func @_fused_hw_blur_kernel(%arg0: i32, %arg1: memref<1x24x24xf32, #tpu.memory_space<vmem>>, %arg2: memref<1x16x16xf32, #tpu.memory_space<vmem>>) attributes {dimension_semantics = [#tpu.dimension_semantics<parallel>], iteration_bounds = array<i64: 8>, scalar_prefetch = 0 : i64, scratch_operands = 0 : i64, tpu.core_type = #tpu.core_type<tc>, window_params = [{transform_indices = @transform_0, window_bounds = array<i64: 1, 24, 24>}, {transform_indices = @transform_1, window_bounds = array<i64: 1, 16, 16>}]} {
    %c0 = arith.constant 0 : index
    %c0_0 = arith.constant 0 : index
    %c0_1 = arith.constant 0 : index
    %0 = vector.load %arg1[%c0, %c0_0, %c0_1] : memref<1x24x24xf32, #tpu.memory_space<vmem>>, vector<1x24x24xf32>
    %1 = vector.shape_cast %0 : vector<1x24x24xf32> to vector<24x24xf32>
    %2 = vector.extract_strided_slice %1 {offsets = [0, 4], sizes = [24, 16], strides = [1, 1]} : vector<24x24xf32> to vector<24x16xf32>
    %cst = arith.constant 0.398943484 : f32
    %3 = vector.broadcast %cst : f32 to vector<24x16xf32>
    %4 = arith.mulf %3, %2 : vector<24x16xf32>
    %5 = vector.extract_strided_slice %1 {offsets = [0, 3], sizes = [24, 16], strides = [1, 1]} : vector<24x24xf32> to vector<24x16xf32>
    %6 = vector.extract_strided_slice %1 {offsets = [0, 5], sizes = [24, 16], strides = [1, 1]} : vector<24x24xf32> to vector<24x16xf32>
    %7 = arith.addf %5, %6 : vector<24x16xf32>
    %cst_2 = arith.constant 0.241971448 : f32
    %8 = vector.broadcast %cst_2 : f32 to vector<24x16xf32>
    %9 = arith.mulf %8, %7 : vector<24x16xf32>
    %10 = arith.addf %4, %9 : vector<24x16xf32>
    %11 = vector.extract_strided_slice %1 {offsets = [0, 2], sizes = [24, 16], strides = [1, 1]} : vector<24x24xf32> to vector<24x16xf32>
    %12 = vector.extract_strided_slice %1 {offsets = [0, 6], sizes = [24, 16], strides = [1, 1]} : vector<24x24xf32> to vector<24x16xf32>
    %13 = arith.addf %11, %12 : vector<24x16xf32>
    %cst_3 = arith.constant 0.0539911278 : f32
    %14 = vector.broadcast %cst_3 : f32 to vector<24x16xf32>
    %15 = arith.mulf %14, %13 : vector<24x16xf32>
    %16 = arith.addf %10, %15 : vector<24x16xf32>
    %17 = vector.extract_strided_slice %1 {offsets = [0, 1], sizes = [24, 16], strides = [1, 1]} : vector<24x24xf32> to vector<24x16xf32>
    %18 = vector.extract_strided_slice %1 {offsets = [0, 7], sizes = [24, 16], strides = [1, 1]} : vector<24x24xf32> to vector<24x16xf32>
    %19 = arith.addf %17, %18 : vector<24x16xf32>
    %cst_4 = arith.constant 0.00443186145 : f32
    %20 = vector.broadcast %cst_4 : f32 to vector<24x16xf32>
    %21 = arith.mulf %20, %19 : vector<24x16xf32>
    %22 = arith.addf %16, %21 : vector<24x16xf32>
    %23 = vector.extract_strided_slice %1 {offsets = [0, 0], sizes = [24, 16], strides = [1, 1]} : vector<24x24xf32> to vector<24x16xf32>
    %24 = vector.extract_strided_slice %1 {offsets = [0, 8], sizes = [24, 16], strides = [1, 1]} : vector<24x24xf32> to vector<24x16xf32>
    %25 = arith.addf %23, %24 : vector<24x16xf32>
    %cst_5 = arith.constant 1.33830617E-4 : f32
    %26 = vector.broadcast %cst_5 : f32 to vector<24x16xf32>
    %27 = arith.mulf %26, %25 : vector<24x16xf32>
    %28 = arith.addf %22, %27 : vector<24x16xf32>
    %29 = vector.extract_strided_slice %28 {offsets = [4, 0], sizes = [16, 16], strides = [1, 1]} : vector<24x16xf32> to vector<16x16xf32>
    %cst_6 = arith.constant 0.398943484 : f32
    %30 = vector.broadcast %cst_6 : f32 to vector<16x16xf32>
    %31 = arith.mulf %30, %29 : vector<16x16xf32>
    %32 = vector.extract_strided_slice %28 {offsets = [3, 0], sizes = [16, 16], strides = [1, 1]} : vector<24x16xf32> to vector<16x16xf32>
    %33 = vector.extract_strided_slice %28 {offsets = [5, 0], sizes = [16, 16], strides = [1, 1]} : vector<24x16xf32> to vector<16x16xf32>
    %34 = arith.addf %32, %33 : vector<16x16xf32>
    %cst_7 = arith.constant 0.241971448 : f32
    %35 = vector.broadcast %cst_7 : f32 to vector<16x16xf32>
    %36 = arith.mulf %35, %34 : vector<16x16xf32>
    %37 = arith.addf %31, %36 : vector<16x16xf32>
    %38 = vector.extract_strided_slice %28 {offsets = [2, 0], sizes = [16, 16], strides = [1, 1]} : vector<24x16xf32> to vector<16x16xf32>
    %39 = vector.extract_strided_slice %28 {offsets = [6, 0], sizes = [16, 16], strides = [1, 1]} : vector<24x16xf32> to vector<16x16xf32>
    %40 = arith.addf %38, %39 : vector<16x16xf32>
    %cst_8 = arith.constant 0.0539911278 : f32
    %41 = vector.broadcast %cst_8 : f32 to vector<16x16xf32>
    %42 = arith.mulf %41, %40 : vector<16x16xf32>
    %43 = arith.addf %37, %42 : vector<16x16xf32>
    %44 = vector.extract_strided_slice %28 {offsets = [1, 0], sizes = [16, 16], strides = [1, 1]} : vector<24x16xf32> to vector<16x16xf32>
    %45 = vector.extract_strided_slice %28 {offsets = [7, 0], sizes = [16, 16], strides = [1, 1]} : vector<24x16xf32> to vector<16x16xf32>
    %46 = arith.addf %44, %45 : vector<16x16xf32>
    %cst_9 = arith.constant 0.00443186145 : f32
    %47 = vector.broadcast %cst_9 : f32 to vector<16x16xf32>
    %48 = arith.mulf %47, %46 : vector<16x16xf32>
    %49 = arith.addf %43, %48 : vector<16x16xf32>
    %50 = vector.extract_strided_slice %28 {offsets = [0, 0], sizes = [16, 16], strides = [1, 1]} : vector<24x16xf32> to vector<16x16xf32>
    %51 = vector.extract_strided_slice %28 {offsets = [8, 0], sizes = [16, 16], strides = [1, 1]} : vector<24x16xf32> to vector<16x16xf32>
    %52 = arith.addf %50, %51 : vector<16x16xf32>
    %cst_10 = arith.constant 1.33830617E-4 : f32
    %53 = vector.broadcast %cst_10 : f32 to vector<16x16xf32>
    %54 = arith.mulf %53, %52 : vector<16x16xf32>
    %55 = arith.addf %49, %54 : vector<16x16xf32>
    %c0_11 = arith.constant 0 : index
    %c0_12 = arith.constant 0 : index
    %c0_13 = arith.constant 0 : index
    %56 = vector.load %arg2[%c0_11, %c0_12, %c0_13] : memref<1x16x16xf32, #tpu.memory_space<vmem>>, vector<1x16x16xf32>
    %57 = vector.shape_cast %56 : vector<1x16x16xf32> to vector<16x16xf32>
    %58 = vector.shape_cast %55 : vector<16x16xf32> to vector<1x16x16xf32>
    tpu.vector_store %arg2[%c0_11, %c0_12, %c0_13], %58 {strides = array<i32>} : memref<1x16x16xf32, #tpu.memory_space<vmem>>, vector<1x16x16xf32>,
    return
  }
  func.func @transform_0(%arg0: i32) -> (i32, i32, i32) {
    %c0_i32 = arith.constant 0 : i32
    %c0_i32_0 = arith.constant 0 : i32
    %c0_i32_1 = arith.constant 0 : i32
    return %arg0, %c0_i32, %c0_i32_0 : i32, i32, i32
  }
  func.func @transform_1(%arg0: i32) -> (i32, i32, i32) {
    %c0_i32 = arith.constant 0 : i32
    %c0_i32_0 = arith.constant 0 : i32
    %c0_i32_1 = arith.constant 0 : i32
    return %arg0, %c0_i32, %c0_i32_0 : i32, i32, i32
  }
}

</mosaic_0001>

<llo_original>
// kernel: tpu_custom_call.1
$region0: #{tpu_custom_call.1}
  #allocation0 [shape = 'u32[]', space=smem, size = 0x4, offset = 0x4, fixed_abs, tag = 'smem constant byte address 0x4 - core index']
  #allocation1 [shape = 'u32[144,128]{1,0:T(1,128)}', space=vmem, size = 0x12000, scoped, tag = 'internal scratch']
  %s0 = inlined_call_operand.hbm [shape: f32[8,24,24], index: 0, kind: input, shape index: {}]
  %s1 = inlined_call_operand.hbm [shape: f32[8,16,16], index: 1, kind: output, shape index: {}]
  %s2 = sld [smem:[#allocation0]]
  $region41: #{tpu_custom_call.1} parent=0
    _
  %s4 = ssub.s32 1, %s2
  %s5 = scalar_select 0, %s4, %s2
  $region1: #{tpu_custom_call.1} parent=0
    #allocation2 [shape = 'u8[24576]{0}', space=vmem, size = 0x6000, scoped, tag = 'input window, operand 0']
    #allocation3 [shape = 's32[2]{0}', space=sflag, size = 0x8, scoped, tag = 'scoped memory for tpu_custom_call.1']
    #allocation4 [shape = 's32[2]{0}', space=sflag, size = 0x8, scoped, tag = 'scoped memory for tpu_custom_call.1']
    #allocation5 [shape = 'u8[16384]{0}', space=vmem, size = 0x4000, scoped, tag = 'output window, operand 0']
    %6 = vsyncpa [#allocation3], 0
    %s7 = scalar_lea.sflag [#allocation3], 1
    %8 = vsyncpa %s7, 0
    %9 = vsyncpa [#allocation4], 0
    %s10 = scalar_lea.sflag [#allocation4], 1
    %11 = vsyncpa %s10, 0
    loop: start=0, step=1, limit=10
    $region2: #{tpu_custom_call.1} parent=1 // loop_pre_header
      _
    $region3: #{tpu_custom_call.1} parent=1 // loop_header
      %s13 = sphi 0, %s17
      %p14 = scmp.ge.s32.totalorder %s13, 10
      %s23 = sphi 0, %s25
      %s26 = sphi 0, %s23
      %s27 = sphi 0, %s26
      %s43 = sphi 0, %s27
      %s49 = sphi 0, %s51
      %s52 = sphi 0, %s49
      %s53 = sphi 0, %s52
      %s69 = sphi 0, %s53
    $region4: #{tpu_custom_call.1} parent=1 // loop_header_branch
      %16 = sbr.rel (%p14) target = $region8
    $region5: #{tpu_custom_call.1} parent=1 // loop_body
      %s18 = ssub.s32 %s13, 1
      %s19 = ssub.s32 %s13, 2
      %s20 = sadd.s32 %s13, 1
      %s21 = ssub.s32 %s13, %s20
      %p22 = scmp.eq.s32.totalorder %s21, 0
      %s24 = sadd.s32 %s23, 1
      %s25 = scalar_select %p22, %s23, %s24
      %p28 = pneg %p22
      %p29 = scmp.eq.s32.totalorder %s13, 7
      %p30 = por %p28, %p29
      %p31 = scmp.ne.s32.totalorder %s23, %s26
      %p32 = scmp.eq.s32.totalorder %s13, 0
      %p33 = por %p31, %p32
      %p34 = scmp.ne.s32.totalorder %s23, %s26
      %p35 = scmp.eq.s32.totalorder %s18, 7
      %p36 = por %p34, %p35
      %p37 = scmp.ne.s32.totalorder %s26, %s27
      %p38 = scmp.eq.s32.totalorder %s18, 0
      %p39 = por %p37, %p38
      %p40 = scmp.ne.s32.totalorder %s26, %s27
      %p41 = scmp.eq.s32.totalorder %s19, 7
      %p42 = por %p40, %p41
      %p44 = scmp.ne.s32.totalorder %s27, %s43
      %p45 = scmp.eq.s32.totalorder %s19, 0
      %p46 = por %p44, %p45
      %s47 = ssub.s32 %s13, %s20
      %p48 = scmp.eq.s32.totalorder %s47, 0
      %s50 = sadd.s32 %s49, 1
      %s51 = scalar_select %p48, %s49, %s50
      %p54 = pneg %p48
      %p55 = scmp.eq.s32.totalorder %s13, 7
      %p56 = por %p54, %p55
      %p57 = scmp.ne.s32.totalorder %s49, %s52
      %p58 = scmp.eq.s32.totalorder %s13, 0
      %p59 = por %p57, %p58
      %p60 = scmp.ne.s32.totalorder %s49, %s52
      %p61 = scmp.eq.s32.totalorder %s18, 7
      %p62 = por %p60, %p61
      %p63 = scmp.ne.s32.totalorder %s52, %s53
      %p64 = scmp.eq.s32.totalorder %s18, 0
      %p65 = por %p63, %p64
      %p66 = scmp.ne.s32.totalorder %s52, %s53
      %p67 = scmp.eq.s32.totalorder %s19, 7
      %p68 = por %p66, %p67
      %p70 = scmp.ne.s32.totalorder %s53, %s69
      %p71 = scmp.eq.s32.totalorder %s19, 0
      %p72 = por %p70, %p71
      %p73 = scmp.le.s32.totalorder 1, %s13
      %p74 = scmp.lt.s32.totalorder %s13, 9
      %p75 = pnand %p73, %p74
      %p76 = pneg %p75
      // Predicated region
      $region9: #{tpu_custom_call.1} parent=5 // pred_check
        _
      $region10: #{tpu_custom_call.1} parent=5 // pred_check_branch
        %78 = sbr.rel (%p75) target = $region12
      $region11: #{tpu_custom_call.1} parent=5 // pred_region
        %s79 = ssub.s32 %s13, 1
      $region12: #{tpu_custom_call.1} parent=5 // pred_fallthru
        _
      %p80 = scmp.lt.s32.totalorder %s13, 8
      // Predicated region
      $region13: #{tpu_custom_call.1} parent=5 // pred_check
        %p81 = pneg %p80
      $region14: #{tpu_custom_call.1} parent=5 // pred_check_branch
        %83 = sbr.rel (%p81) target = $region16
      $region15: #{tpu_custom_call.1} parent=5 // pred_region
        // Predicated region
        $region17: #{tpu_custom_call.1} parent=15 // pred_check
          %p84 = pneg %p33
        $region18: #{tpu_custom_call.1} parent=15 // pred_check_branch
          %86 = sbr.rel (%p84) target = $region20
        $region19: #{tpu_custom_call.1} parent=15 // pred_region
          %s87 = sand.u32 %s23, 1
          %s88 = scalar_lea.sflag [#allocation3], %s87
          %s89 = sand.u32 %s23, 1
          %s90 = smul.addr %s89, 24
          %s91 = scalar_lea.vmem [#allocation2], %s90
          %s93 = ssub.s32 384, 384
          %94 = vsyncadd %s88, %s93
          %s95 = smul.addr %s13, 3
          %s96 = smul.addr %s95, 128
          %s97 = scalar_lea.hbm %s0, %s96
          %s98 = sshll.u32 %s91, 4
          %s99 = int_to_ptr.vmem [resolvable:$true] %s98
          %104 = dma.hbm_to_vmem [thread:$0]  %s97, 384, %s99, %s88, 128, 128, 8
        $region20: #{tpu_custom_call.1} parent=15 // pred_fallthru
          _
      $region16: #{tpu_custom_call.1} parent=5 // pred_fallthru
        _
      %p105 = scmp.le.s32.totalorder 1, %s13
      %p106 = scmp.lt.s32.totalorder %s13, 9
      %p107 = pnand %p105, %p106
      %p108 = pneg %p107
      // Predicated region
      $region21: #{tpu_custom_call.1} parent=5 // pred_check
        _
      $region22: #{tpu_custom_call.1} parent=5 // pred_check_branch
        %110 = sbr.rel (%p107) target = $region24
      $region23: #{tpu_custom_call.1} parent=5 // pred_region
        %s111 = ssub.s32 %s13, 1
        %s112 = sand.u32 %s26, 1
        %s113 = scalar_lea.sflag [#allocation3], %s112
        %s114 = sand.u32 %s26, 1
        %s115 = smul.addr %s114, 24
        %s116 = scalar_lea.vmem [#allocation2], %s115
        // Predicated region
        $region25: #{tpu_custom_call.1} parent=23 // pred_check
          %p117 = pneg %p39
        $region26: #{tpu_custom_call.1} parent=23 // pred_check_branch
          %119 = sbr.rel (%p117) target = $region28
        $region27: #{tpu_custom_call.1} parent=23 // pred_region
          %120 = dma.done %s113, 384
        $region28: #{tpu_custom_call.1} parent=23 // pred_fallthru
          _
        %s121 = sand.u32 %s26, 1
        %s122 = scalar_lea.sflag [#allocation3], %s121
        %s123 = sand.u32 %s26, 1
        %s124 = smul.addr %s123, 24
        %s125 = scalar_lea.vmem [#allocation2], %s124
        %p126 = pneg %p39
        %p127 = pneg %p36
        %p128 = pneg %p65
        %p129 = pneg %p62
        %s130 = sand.u32 %s52, 1
        %s131 = scalar_lea.sflag [#allocation4], %s130
        %s132 = sand.u32 %s52, 1
        %s133 = smul.addr %s132, 16
        %s134 = scalar_lea.vmem [#allocation5], %s133
        %v135 = vld [vmem:[%s116] sm:$0xff]
        %v136 = vld [vmem:[%s116 + $0x8] sm:$0xff]
        %v137 = vld [vmem:[%s116 + $0x10] sm:$0xff]
        %v138 = vmul.f32 %v135, 0.39894348
        %v139 = vmul.f32 %v136, 0.39894348
        %v140 = vmul.f32 %v137, 0.39894348
        %144 = vrot.lane.b32.xlu0 %v135, 126
        %v145 = vpop.permute.xlu0 %144
        %146 = vrot.lane.b32.xlu0 %v136, 126
        %v147 = vpop.permute.xlu0 %146
        %148 = vrot.lane.b32.xlu0 %v137, 126
        %v149 = vpop.permute.xlu0 %148
        %v153 = vadd.f32 %v135, %v145
        %v154 = vadd.f32 %v136, %v147
        %v155 = vadd.f32 %v137, %v149
        %v156 = vmul.f32 %v153, 0.24197145
        %v157 = vmul.f32 %v154, 0.24197145
        %v158 = vmul.f32 %v155, 0.24197145
        %162 = vrot.lane.b32.xlu0 %v156, 1
        %v163 = vpop.permute.xlu0 %162
        %164 = vrot.lane.b32.xlu0 %v157, 1
        %v165 = vpop.permute.xlu0 %164
        %166 = vrot.lane.b32.xlu0 %v158, 1
        %v167 = vpop.permute.xlu0 %166
        %v171 = vadd.f32 %v138, %v163
        %v172 = vadd.f32 %v139, %v165
        %v173 = vadd.f32 %v140, %v167
        %174 = vrot.lane.b32.xlu0 %v135, 124
        %v175 = vpop.permute.xlu0 %174
        %176 = vrot.lane.b32.xlu0 %v136, 124
        %v177 = vpop.permute.xlu0 %176
        %178 = vrot.lane.b32.xlu0 %v137, 124
        %v179 = vpop.permute.xlu0 %178
        %v183 = vadd.f32 %v135, %v175
        %v184 = vadd.f32 %v136, %v177
        %v185 = vadd.f32 %v137, %v179
        %v186 = vmul.f32 %v183, 0.053991128
        %v187 = vmul.f32 %v184, 0.053991128
        %v188 = vmul.f32 %v185, 0.053991128
        %192 = vrot.lane.b32.xlu0 %v186, 2
        %v193 = vpop.permute.xlu0 %192
        %194 = vrot.lane.b32.xlu0 %v187, 2
        %v195 = vpop.permute.xlu0 %194
        %196 = vrot.lane.b32.xlu0 %v188, 2
        %v197 = vpop.permute.xlu0 %196
        %v201 = vadd.f32 %v171, %v193
        %v202 = vadd.f32 %v172, %v195
        %v203 = vadd.f32 %v173, %v197
        %204 = vrot.lane.b32.xlu0 %v135, 122
        %v205 = vpop.permute.xlu0 %204
        %206 = vrot.lane.b32.xlu0 %v136, 122
        %v207 = vpop.permute.xlu0 %206
        %208 = vrot.lane.b32.xlu0 %v137, 122
        %v209 = vpop.permute.xlu0 %208
        %v213 = vadd.f32 %v135, %v205
        %v214 = vadd.f32 %v136, %v207
        %v215 = vadd.f32 %v137, %v209
        %v216 = vmul.f32 %v213, 0.0044318615
        %v217 = vmul.f32 %v214, 0.0044318615
        %v218 = vmul.f32 %v215, 0.0044318615
        %222 = vrot.lane.b32.xlu0 %v216, 3
        %v223 = vpop.permute.xlu0 %222
        %224 = vrot.lane.b32.xlu0 %v217, 3
        %v225 = vpop.permute.xlu0 %224
        %226 = vrot.lane.b32.xlu0 %v218, 3
        %v227 = vpop.permute.xlu0 %226
        %v231 = vadd.f32 %v201, %v223
        %v232 = vadd.f32 %v202, %v225
        %v233 = vadd.f32 %v203, %v227
        %234 = vrot.lane.b32.xlu0 %v135, 120
        %v235 = vpop.permute.xlu0 %234
        %236 = vrot.lane.b32.xlu0 %v136, 120
        %v237 = vpop.permute.xlu0 %236
        %238 = vrot.lane.b32.xlu0 %v137, 120
        %v239 = vpop.permute.xlu0 %238
        %v243 = vadd.f32 %v135, %v235
        %v244 = vadd.f32 %v136, %v237
        %v245 = vadd.f32 %v137, %v239
        %v246 = vmul.f32 %v243, 0.00013383062
        %v247 = vmul.f32 %v244, 0.00013383062
        %v248 = vmul.f32 %v245, 0.00013383062
        %252 = vrot.lane.b32.xlu0 %v246, 4
        %v253 = vpop.permute.xlu0 %252
        %254 = vrot.lane.b32.xlu0 %v247, 4
        %v255 = vpop.permute.xlu0 %254
        %256 = vrot.lane.b32.xlu0 %v248, 4
        %v257 = vpop.permute.xlu0 %256
        %v261 = vadd.f32 %v231, %v253
        %v262 = vadd.f32 %v232, %v255
        %v263 = vadd.f32 %v233, %v257
        %v264 = vmul.f32 %v261, 0.39894348
        %v265 = vmul.f32 %v262, 0.39894348
        %v266 = vmul.f32 %v263, 0.39894348
        %vm270 = vcmask 1045504
        %v271 = vrot.slane %v261, 2
        %v272 = vrot.slane %v262, 2
        %v273 = vsel %vm270, %v271, %v272
        %v274 = vrot.slane %v263, 2
        %v275 = vsel %vm270, %v272, %v274
        %v279 = vadd.f32 %v261, %v273
        %v280 = vadd.f32 %v262, %v275
        %v281 = vadd.f32 %v263, %v274
        %v282 = vmul.f32 %v279, 0.24197145
        %v283 = vmul.f32 %v280, 0.24197145
        %v284 = vmul.f32 %v281, 0.24197145
        %vm288 = vcmask 1040384
        %v289 = vrot.slane %v282, 7
        %v290 = vrot.slane %v283, 7
        %v291 = vsel %vm288, %v289, %v290
        %v292 = vrot.slane %v284, 7
        %v293 = vsel %vm288, %v290, %v292
        %v297 = vadd.f32 %v264, %v289
        %v298 = vadd.f32 %v265, %v291
        %v299 = vadd.f32 %v266, %v293
        %vm300 = vcmask 1043456
        %v301 = vrot.slane %v261, 4
        %v302 = vrot.slane %v262, 4
        %v303 = vsel %vm300, %v301, %v302
        %v304 = vrot.slane %v263, 4
        %v305 = vsel %vm300, %v302, %v304
        %v309 = vadd.f32 %v261, %v303
        %v310 = vadd.f32 %v262, %v305
        %v311 = vadd.f32 %v263, %v304
        %v312 = vmul.f32 %v309, 0.053991128
        %v313 = vmul.f32 %v310, 0.053991128
        %v314 = vmul.f32 %v311, 0.053991128
        %vm318 = vcmask 1041408
        %v319 = vrot.slane %v312, 6
        %v320 = vrot.slane %v313, 6
        %v321 = vsel %vm318, %v319, %v320
        %v322 = vrot.slane %v314, 6
        %v323 = vsel %vm318, %v320, %v322
        %v327 = vadd.f32 %v297, %v319
        %v328 = vadd.f32 %v298, %v321
        %v329 = vadd.f32 %v299, %v323
        %v330 = vrot.slane %v261, 6
        %v331 = vrot.slane %v262, 6
        %v332 = vsel %vm318, %v330, %v331
        %v333 = vrot.slane %v263, 6
        %v334 = vsel %vm318, %v331, %v333
        %v338 = vadd.f32 %v261, %v332
        %v339 = vadd.f32 %v262, %v334
        %v340 = vadd.f32 %v263, %v333
        %v341 = vmul.f32 %v338, 0.0044318615
        %v342 = vmul.f32 %v339, 0.0044318615
        %v343 = vmul.f32 %v340, 0.0044318615
        %vm347 = vcmask 1042432
        %v348 = vrot.slane %v341, 5
        %v349 = vrot.slane %v342, 5
        %v350 = vsel %vm347, %v348, %v349
        %v351 = vrot.slane %v343, 5
        %v352 = vsel %vm347, %v349, %v351
        %v356 = vadd.f32 %v327, %v348
        %v357 = vadd.f32 %v328, %v350
        %v358 = vadd.f32 %v329, %v352
        %v359 = vadd.f32 %v261, %v262
        %v360 = vadd.f32 %v262, %v263
        %v361 = vmul.f32 %v359, 0.00013383062
        %v362 = vmul.f32 %v360, 0.00013383062
        %v365 = vrot.slane %v361, 4
        %v366 = vrot.slane %v362, 4
        %v367 = vsel %vm300, %v365, %v366
        %v371 = vadd.f32 %v356, %v365
        %v372 = vadd.f32 %v357, %v367
        %v373 = vadd.f32 %v358, %v366
        %377 = vrot.lane.b32.xlu0 %v371, 124
        %v378 = vpop.permute.xlu0 %377
        %379 = vrot.lane.b32.xlu0 %v372, 124
        %v380 = vpop.permute.xlu0 %379
        %381 = vrot.lane.b32.xlu0 %v373, 124
        %v382 = vpop.permute.xlu0 %381
        %vm386 = vcmask 130052
        %387 = vst.msk [vmem:[%s134 - $0x4] sm:$0xf0] %vm386, %v378
        %vm388 = vcmask 130048
        %389 = vst.msk [vmem:[%s134 + $0x4] sm:$0xff] %vm388, %v380
        %vm390 = vcmask 125952
        %391 = vst.msk [vmem:[%s134 + $0xc] sm:$0xf] %vm390, %v382
        %s392 = sand.u32 %s52, 1
        %s393 = scalar_lea.sflag [#allocation4], %s392
        %s394 = sand.u32 %s52, 1
        %s395 = smul.addr %s394, 16
        %s396 = scalar_lea.vmem [#allocation5], %s395
        // Predicated region
        $region29: #{tpu_custom_call.1} parent=23 // pred_check
          %p397 = pneg %p62
        $region30: #{tpu_custom_call.1} parent=23 // pred_check_branch
          %399 = sbr.rel (%p397) target = $region32
        $region31: #{tpu_custom_call.1} parent=23 // pred_region
          %s401 = ssub.s32 256, 256
          %402 = vsyncadd %s393, %s401
          %s403 = smul.addr %s18, 2
          %s404 = smul.addr %s403, 128
          %s405 = scalar_lea.hbm %s1, %s404
          %s406 = sshll.u32 %s396, 4
          %s407 = int_to_ptr.vmem [resolvable:$true] %s406
          %412 = dma.vmem_to_hbm [thread:$0]  %s407, 256, %s405, %s393, 128, 128, 8
        $region32: #{tpu_custom_call.1} parent=23 // pred_fallthru
          _
      $region24: #{tpu_custom_call.1} parent=5 // pred_fallthru
        _
      %p413 = scmp.le.s32.totalorder 2, %s13
      // Predicated region
      $region33: #{tpu_custom_call.1} parent=5 // pred_check
        %p414 = pneg %p413
      $region34: #{tpu_custom_call.1} parent=5 // pred_check_branch
        %416 = sbr.rel (%p414) target = $region36
      $region35: #{tpu_custom_call.1} parent=5 // pred_region
        %s417 = ssub.s32 %s13, 2
        // Predicated region
        $region37: #{tpu_custom_call.1} parent=35 // pred_check
          %p418 = pneg %p68
        $region38: #{tpu_custom_call.1} parent=35 // pred_check_branch
          %420 = sbr.rel (%p418) target = $region40
        $region39: #{tpu_custom_call.1} parent=35 // pred_region
          %s421 = sand.u32 %s53, 1
          %s422 = scalar_lea.sflag [#allocation4], %s421
          %s423 = sand.u32 %s53, 1
          %s424 = smul.addr %s423, 16
          %s425 = scalar_lea.vmem [#allocation5], %s424
          %426 = dma.done %s422, 256
        $region40: #{tpu_custom_call.1} parent=35 // pred_fallthru
          _
      $region36: #{tpu_custom_call.1} parent=5 // pred_fallthru
        _
    $region6: #{tpu_custom_call.1} parent=1 // loop_footer
      %s17 = sadd.s32 1, %s13
    $region7: #{tpu_custom_call.1} parent=1 // loop_footer_branch
      %12 = sbr.rel target = $region3
    $region8: #{tpu_custom_call.1} parent=1 // loop_exit
      _
    %427 = vsyncpa [#allocation3], 1
    %s428 = scalar_lea.sflag [#allocation3], 1
    %429 = vsyncpa %s428, 1
    %430 = vsyncpa [#allocation4], 1
    %s431 = scalar_lea.sflag [#allocation4], 1
    %432 = vsyncpa %s431, 1

</llo_original>
